<compile_context>
chip_gen: v7x
topology: tpu7x:2x2x1
jax: 0.10.0
libtpu: 0.0.40
codegen_flags: <defaults>
</compile_context>

<pallas_src>
import functools

import jax
import jax.numpy as jnp
from jax.experimental import pallas as pl
from jax.experimental.pallas import tpu as pltpu

NDIM = 32
NBLOCKS = 5
LEAKY_SLOPE = 0.01  # nn.LeakyReLU default negative_slope


def rezero_kernel(x_ref, wt_ref, prm_ref, o_ref, *, nblocks, compute_dtype):
    # x_ref:   (tile_r, LANES)           packed activations
    # wt_ref:  (nblocks, LANES, LANES)   block-diagonal W^T (compute_dtype)
    # prm_ref: (nblocks, 3, LANES) f32   rows: [bias, alpha, slope*alpha]
    #                                    (last block: alpha already folded into W/b)
    h = x_ref[...].astype(jnp.float32)
    for k in range(nblocks):  # static unroll: nblocks is a small compile-time const
        prm = prm_ref[k]                                      # (3, LANES)
        y = jnp.dot(h.astype(compute_dtype), wt_ref[k],
                    preferred_element_type=jnp.float32)
        y = y + prm[0:1]
        if k < nblocks - 1:
            # LeakyReLU fused with the alpha scaling:
            #   where(y>0, y, s*y) * a  ==  y * where(y>0, a, s*a)
            y = y * jnp.where(y > 0, prm[1:2], prm[2:3])
        # last block: identity activation, alpha folded into W/b in the wrapper.
        h = y + h
    o_ref[...] = h.astype(o_ref.dtype)


def rezero_forward(x, w_stack, b_stack, a_stack, *,
                   target_tile_rows=2048, compute_dtype=jnp.bfloat16,
                   out_dtype=None):
    """x: (B, ndim). w_stack: (nblocks, ndim, ndim) PyTorch-layout nn.Linear
       weights. b_stack / a_stack: (nblocks, ndim)."""
    B, ndim = x.shape
    nblocks = w_stack.shape[0]
    # Pass out_dtype=jnp.bfloat16 to halve output HBM bytes if downstream allows.
    out_dtype = out_dtype or x.dtype

    pack = max(1, 128 // ndim)     # rows packed per 128-lane row (4 for ndim=32)
    lanes = ndim * pack            # 128 for ndim=32

    # ---- parameter glue (runs once, outside the kernel) ----
    wt = jnp.transpose(w_stack, (0, 2, 1)).astype(jnp.float32)     # W^T
    b = b_stack.reshape(nblocks, ndim).astype(jnp.float32)
    a = a_stack.reshape(nblocks, ndim).astype(jnp.float32)
    # Fold last block's alpha (identity activation) into its W^T and b.
    wt = wt.at[-1].multiply(a[-1][None, :])
    b = b.at[-1].multiply(a[-1])
    # Block-diagonal expansion: `pack` batch rows share one 128-lane row.
    eye = jnp.eye(pack, dtype=jnp.float32)
    wt_bd = jnp.einsum('pq,kij->kpiqj', eye, wt).reshape(nblocks, lanes, lanes)
    wt_bd = wt_bd.astype(compute_dtype)                    # bf16 MXU operands
    # Merged per-block params: [bias, alpha, slope*alpha] tiled to 128 lanes.
    b_l = jnp.tile(b, (1, pack))                           # (nblocks, lanes)
    a_l = jnp.tile(a, (1, pack))
    prm = jnp.stack([b_l, a_l, LEAKY_SLOPE * a_l], axis=1)  # (nblocks, 3, lanes)

    # ---- pack the batch into lane-dense rows (remainder pad only, if any) ----
    pad_b = (-B) % pack
    xp = jnp.pad(x, ((0, pad_b), (0, 0))) if pad_b else x
    bp = xp.shape[0] // pack
    xp = xp.reshape(bp, lanes)

    # ---- tile selection ----
    # Large tiles amortize the ~0.35 us/grid-step overhead; aim for >= 4 grid
    # steps (>= 2 tiles per v7x TensorCore so each core still pipelines). No
    # padding of the batch to whole tiles: the last partial block is handled by
    # the pipeline (OOB reads are garbage but rows are independent; OOB writes
    # are masked), avoiding an extra HBM round-trip of x and the output.
    if bp <= 8:
        tile_r = bp                                   # whole array in one block
    else:
        min_tiles = 4
        tile_r = min(target_tile_rows,
                     max(8, ((pl.cdiv(bp, min_tiles) + 7) // 8) * 8))
    n_tiles = pl.cdiv(bp, tile_r)

    # VMEM budget: in+out double-buffered = 4 * tile_r * lanes * 4B (~4 MiB at
    # tile_r=2048) + ~2 tiles of f32 temps + ~180 KiB params -> fits scoped
    # defaults everywhere at the 2048 target. Raise the limit for bigger tiles
    # (v5e scoped default is 16 MiB; v7x physical VMEM is 64 MiB/TC).
    cp_kwargs = dict(dimension_semantics=("parallel",))
    if tile_r > 2048:
        cp_kwargs["vmem_limit_bytes"] = 32 * 1024 * 1024

    kernel = functools.partial(rezero_kernel, nblocks=nblocks,
                               compute_dtype=compute_dtype)
    out_packed = pl.pallas_call(
        kernel,
        out_shape=jax.ShapeDtypeStruct((bp, lanes), out_dtype),
        grid_spec=pltpu.PrefetchScalarGridSpec(
            num_scalar_prefetch=0,
            grid=(n_tiles,),
            in_specs=[
                # If a profile shows exposed input DMA at very large grids, try
                # pipeline_mode=pl.Buffered(3) on this spec only.
                pl.BlockSpec((tile_r, lanes), lambda i: (i, 0)),
                pl.BlockSpec((nblocks, lanes, lanes), lambda i: (0, 0, 0)),
                pl.BlockSpec((nblocks, 3, lanes), lambda i: (0, 0, 0)),
            ],
            out_specs=pl.BlockSpec((tile_r, lanes), lambda i: (i, 0)),
        ),
        compiler_params=pltpu.CompilerParams(**cp_kwargs),
    )(xp, wt_bd, prm)

    # Unpack lanes back to (B, ndim). When B % pack == 0 the slice is a no-op.
    return out_packed.reshape(-1, ndim)[:B]


def rezero_reference(x, w_stack, b_stack, a_stack):
    h = x
    nblocks = w_stack.shape[0]
    for k in range(nblocks):
        y = h @ w_stack[k].T + b_stack[k]
        if k < nblocks - 1:
            y = jnp.where(y > 0, y, LEAKY_SLOPE * y)
        y = y * a_stack[k]
        h = y + h
    return h


if __name__ == "__main__":
    key = jax.random.PRNGKey(0)
    kx, kw, kb, ka, kx2 = jax.random.split(key, 5)

    batch = 8
    x = jax.random.normal(kx, (batch, NDIM), dtype=jnp.float32)

    # Deterministic synthetic parameters (shapes match nn.Linear(ndim, ndim)
    # and alpha (1, ndim)). NOTE: PyTorch inits alpha to zeros (trivial
    # identity forward); small random alphas actually exercise the compute path.
    bound = 1.0 / (NDIM ** 0.5)
    w_stack = jax.random.uniform(kw, (NBLOCKS, NDIM, NDIM),
                                 minval=-bound, maxval=bound, dtype=jnp.float32)
    b_stack = jax.random.uniform(kb, (NBLOCKS, NDIM),
                                 minval=-bound, maxval=bound, dtype=jnp.float32)
    a_stack = 0.1 * jax.random.normal(ka, (NBLOCKS, NDIM), dtype=jnp.float32)

    ref = rezero_reference(x, w_stack, b_stack, a_stack)

    # Exactness check with f32 matmul operands.
    out_f32 = jax.block_until_ready(
        rezero_forward(x, w_stack, b_stack, a_stack, compute_dtype=jnp.float32))
    assert out_f32.shape == (batch, NDIM)
    assert jnp.allclose(out_f32, ref, atol=1e-5, rtol=1e-5), "f32 mismatch vs reference"

    # Default (optimized) path: bf16 MXU operands, f32 accumulation/elementwise.
    out = jax.block_until_ready(rezero_forward(x, w_stack, b_stack, a_stack))
    assert out.shape == (batch, NDIM)
    assert jnp.allclose(out, ref, atol=2e-2, rtol=2e-2), "bf16 mismatch vs reference"

    # Multi-tile grid with a partial last block (exercises the no-padding path:
    # batch=300 -> 75 packed rows -> tile_r=24, grid=(4,), last block partial).
    batch2 = 300
    x2 = jax.random.normal(kx2, (batch2, NDIM), dtype=jnp.float32)
    ref2 = rezero_reference(x2, w_stack, b_stack, a_stack)
    out2 = jax.block_until_ready(rezero_forward(x2, w_stack, b_stack, a_stack))
    assert out2.shape == (batch2, NDIM)
    assert jnp.allclose(out2, ref2, atol=2e-2, rtol=2e-2), "multi-tile mismatch vs reference"

    print("KERNEL_OK")
</pallas_src>

<mosaic_0001>
module attributes {stable_mosaic.version = 11 : i64} {
  func.func @rezero_kernel(%arg0: i32, %arg1: memref<2x128xf32, #tpu.memory_space<vmem>>, %arg2: memref<5x128x128xf32, #tpu.memory_space<vmem>>, %arg3: memref<5x3x128xf32, #tpu.memory_space<vmem>>, %arg4: memref<2x128xf32, #tpu.memory_space<vmem>>) attributes {dimension_semantics = [#tpu.dimension_semantics<parallel>], iteration_bounds = array<i64: 1>, scalar_prefetch = 0 : i64, scratch_operands = 0 : i64, tpu.core_type = #tpu.core_type<tc>, window_params = [{transform_indices = @transform_0, window_bounds = array<i64: 2, 128>}, {pipeline_mode = #tpu.pipeline_mode<synchronous>, transform_indices = @transform_1, window_bounds = array<i64: 5, 128, 128>}, {pipeline_mode = #tpu.pipeline_mode<synchronous>, transform_indices = @transform_2, window_bounds = array<i64: 5, 3, 128>}, {transform_indices = @transform_3, window_bounds = array<i64: 2, 128>}]} {
    %c0 = arith.constant 0 : index
    %c0_0 = arith.constant 0 : index
    %0 = vector.load %arg1[%c0, %c0_0] : memref<2x128xf32, #tpu.memory_space<vmem>>, vector<2x128xf32>
    %c0_1 = arith.constant 0 : index
    %c0_2 = arith.constant 0 : index
    %c0_3 = arith.constant 0 : index
    %1 = vector.load %arg3[%c0_1, %c0_2, %c0_3] : memref<5x3x128xf32, #tpu.memory_space<vmem>>, vector<1x3x128xf32>
    %2 = vector.shape_cast %1 : vector<1x3x128xf32> to vector<3x128xf32>
    %c0_4 = arith.constant 0 : index
    %c0_5 = arith.constant 0 : index
    %c0_6 = arith.constant 0 : index
    %3 = vector.load %arg2[%c0_4, %c0_5, %c0_6] : memref<5x128x128xf32, #tpu.memory_space<vmem>>, vector<1x128x128xf32>
    %4 = vector.shape_cast %3 : vector<1x128x128xf32> to vector<128x128xf32>
    %cst = arith.constant dense<0.000000e+00> : vector<2x128xf32>
    %5 = tpu.matmul %0, %4, %cst {dimension_numbers = #tpu.dot_dimension_numbers<[1], [0], [0], [1], [0, 0, 1, 1], [], []>} : vector<2x128xf32>, vector<128x128xf32>, vector<2x128xf32> -> vector<2x128xf32>
    %6 = vector.extract_strided_slice %2 {offsets = [0, 0], sizes = [1, 128], strides = [1, 1]} : vector<3x128xf32> to vector<1x128xf32>
    %7 = vector.broadcast %6 : vector<1x128xf32> to vector<2x128xf32>
    %8 = arith.addf %5, %7 : vector<2x128xf32>
    %cst_7 = arith.constant 0.000000e+00 : f32
    %9 = vector.broadcast %cst_7 : f32 to vector<2x128xf32>
    %10 = arith.cmpf ogt, %8, %9 : vector<2x128xf32>
    %11 = vector.extract_strided_slice %2 {offsets = [1, 0], sizes = [1, 128], strides = [1, 1]} : vector<3x128xf32> to vector<1x128xf32>
    %12 = vector.extract_strided_slice %2 {offsets = [2, 0], sizes = [1, 128], strides = [1, 1]} : vector<3x128xf32> to vector<1x128xf32>
    %13 = vector.shape_cast %11 : vector<1x128xf32> to vector<1x128xf32>
    %14 = vector.broadcast %13 : vector<1x128xf32> to vector<2x128xf32>
    %15 = vector.shape_cast %12 : vector<1x128xf32> to vector<1x128xf32>
    %16 = vector.broadcast %15 : vector<1x128xf32> to vector<2x128xf32>
    %17 = arith.select %10, %14, %16 : vector<2x128xi1>, vector<2x128xf32>
    %18 = arith.mulf %8, %17 : vector<2x128xf32>
    %19 = arith.addf %18, %0 : vector<2x128xf32>
    %c1 = arith.constant 1 : index
    %c0_8 = arith.constant 0 : index
    %c0_9 = arith.constant 0 : index
    %20 = vector.load %arg3[%c1, %c0_8, %c0_9] : memref<5x3x128xf32, #tpu.memory_space<vmem>>, vector<1x3x128xf32>
    %21 = vector.shape_cast %20 : vector<1x3x128xf32> to vector<3x128xf32>
    %c1_10 = arith.constant 1 : index
    %c0_11 = arith.constant 0 : index
    %c0_12 = arith.constant 0 : index
    %22 = vector.load %arg2[%c1_10, %c0_11, %c0_12] : memref<5x128x128xf32, #tpu.memory_space<vmem>>, vector<1x128x128xf32>
    %23 = vector.shape_cast %22 : vector<1x128x128xf32> to vector<128x128xf32>
    %cst_13 = arith.constant dense<0.000000e+00> : vector<2x128xf32>
    %24 = tpu.matmul %19, %23, %cst_13 {dimension_numbers = #tpu.dot_dimension_numbers<[1], [0], [0], [1], [0, 0, 1, 1], [], []>} : vector<2x128xf32>, vector<128x128xf32>, vector<2x128xf32> -> vector<2x128xf32>
    %25 = vector.extract_strided_slice %21 {offsets = [0, 0], sizes = [1, 128], strides = [1, 1]} : vector<3x128xf32> to vector<1x128xf32>
    %26 = vector.broadcast %25 : vector<1x128xf32> to vector<2x128xf32>
    %27 = arith.addf %24, %26 : vector<2x128xf32>
    %cst_14 = arith.constant 0.000000e+00 : f32
    %28 = vector.broadcast %cst_14 : f32 to vector<2x128xf32>
    %29 = arith.cmpf ogt, %27, %28 : vector<2x128xf32>
    %30 = vector.extract_strided_slice %21 {offsets = [1, 0], sizes = [1, 128], strides = [1, 1]} : vector<3x128xf32> to vector<1x128xf32>
    %31 = vector.extract_strided_slice %21 {offsets = [2, 0], sizes = [1, 128], strides = [1, 1]} : vector<3x128xf32> to vector<1x128xf32>
    %32 = vector.shape_cast %30 : vector<1x128xf32> to vector<1x128xf32>
    %33 = vector.broadcast %32 : vector<1x128xf32> to vector<2x128xf32>
    %34 = vector.shape_cast %31 : vector<1x128xf32> to vector<1x128xf32>
    %35 = vector.broadcast %34 : vector<1x128xf32> to vector<2x128xf32>
    %36 = arith.select %29, %33, %35 : vector<2x128xi1>, vector<2x128xf32>
    %37 = arith.mulf %27, %36 : vector<2x128xf32>
    %38 = arith.addf %37, %19 : vector<2x128xf32>
    %c2 = arith.constant 2 : index
    %c0_15 = arith.constant 0 : index
    %c0_16 = arith.constant 0 : index
    %39 = vector.load %arg3[%c2, %c0_15, %c0_16] : memref<5x3x128xf32, #tpu.memory_space<vmem>>, vector<1x3x128xf32>
    %40 = vector.shape_cast %39 : vector<1x3x128xf32> to vector<3x128xf32>
    %c2_17 = arith.constant 2 : index
    %c0_18 = arith.constant 0 : index
    %c0_19 = arith.constant 0 : index
    %41 = vector.load %arg2[%c2_17, %c0_18, %c0_19] : memref<5x128x128xf32, #tpu.memory_space<vmem>>, vector<1x128x128xf32>
    %42 = vector.shape_cast %41 : vector<1x128x128xf32> to vector<128x128xf32>
    %cst_20 = arith.constant dense<0.000000e+00> : vector<2x128xf32>
    %43 = tpu.matmul %38, %42, %cst_20 {dimension_numbers = #tpu.dot_dimension_numbers<[1], [0], [0], [1], [0, 0, 1, 1], [], []>} : vector<2x128xf32>, vector<128x128xf32>, vector<2x128xf32> -> vector<2x128xf32>
    %44 = vector.extract_strided_slice %40 {offsets = [0, 0], sizes = [1, 128], strides = [1, 1]} : vector<3x128xf32> to vector<1x128xf32>
    %45 = vector.broadcast %44 : vector<1x128xf32> to vector<2x128xf32>
    %46 = arith.addf %43, %45 : vector<2x128xf32>
    %cst_21 = arith.constant 0.000000e+00 : f32
    %47 = vector.broadcast %cst_21 : f32 to vector<2x128xf32>
    %48 = arith.cmpf ogt, %46, %47 : vector<2x128xf32>
    %49 = vector.extract_strided_slice %40 {offsets = [1, 0], sizes = [1, 128], strides = [1, 1]} : vector<3x128xf32> to vector<1x128xf32>
    %50 = vector.extract_strided_slice %40 {offsets = [2, 0], sizes = [1, 128], strides = [1, 1]} : vector<3x128xf32> to vector<1x128xf32>
    %51 = vector.shape_cast %49 : vector<1x128xf32> to vector<1x128xf32>
    %52 = vector.broadcast %51 : vector<1x128xf32> to vector<2x128xf32>
    %53 = vector.shape_cast %50 : vector<1x128xf32> to vector<1x128xf32>
    %54 = vector.broadcast %53 : vector<1x128xf32> to vector<2x128xf32>
    %55 = arith.select %48, %52, %54 : vector<2x128xi1>, vector<2x128xf32>
    %56 = arith.mulf %46, %55 : vector<2x128xf32>
    %57 = arith.addf %56, %38 : vector<2x128xf32>
    %c3 = arith.constant 3 : index
    %c0_22 = arith.constant 0 : index
    %c0_23 = arith.constant 0 : index
    %58 = vector.load %arg3[%c3, %c0_22, %c0_23] : memref<5x3x128xf32, #tpu.memory_space<vmem>>, vector<1x3x128xf32>
    %59 = vector.shape_cast %58 : vector<1x3x128xf32> to vector<3x128xf32>
    %c3_24 = arith.constant 3 : index
    %c0_25 = arith.constant 0 : index
    %c0_26 = arith.constant 0 : index
    %60 = vector.load %arg2[%c3_24, %c0_25, %c0_26] : memref<5x128x128xf32, #tpu.memory_space<vmem>>, vector<1x128x128xf32>
    %61 = vector.shape_cast %60 : vector<1x128x128xf32> to vector<128x128xf32>
    %cst_27 = arith.constant dense<0.000000e+00> : vector<2x128xf32>
    %62 = tpu.matmul %57, %61, %cst_27 {dimension_numbers = #tpu.dot_dimension_numbers<[1], [0], [0], [1], [0, 0, 1, 1], [], []>} : vector<2x128xf32>, vector<128x128xf32>, vector<2x128xf32> -> vector<2x128xf32>
    %63 = vector.extract_strided_slice %59 {offsets = [0, 0], sizes = [1, 128], strides = [1, 1]} : vector<3x128xf32> to vector<1x128xf32>
    %64 = vector.broadcast %63 : vector<1x128xf32> to vector<2x128xf32>
    %65 = arith.addf %62, %64 : vector<2x128xf32>
    %cst_28 = arith.constant 0.000000e+00 : f32
    %66 = vector.broadcast %cst_28 : f32 to vector<2x128xf32>
    %67 = arith.cmpf ogt, %65, %66 : vector<2x128xf32>
    %68 = vector.extract_strided_slice %59 {offsets = [1, 0], sizes = [1, 128], strides = [1, 1]} : vector<3x128xf32> to vector<1x128xf32>
    %69 = vector.extract_strided_slice %59 {offsets = [2, 0], sizes = [1, 128], strides = [1, 1]} : vector<3x128xf32> to vector<1x128xf32>
    %70 = vector.shape_cast %68 : vector<1x128xf32> to vector<1x128xf32>
    %71 = vector.broadcast %70 : vector<1x128xf32> to vector<2x128xf32>
    %72 = vector.shape_cast %69 : vector<1x128xf32> to vector<1x128xf32>
    %73 = vector.broadcast %72 : vector<1x128xf32> to vector<2x128xf32>
    %74 = arith.select %67, %71, %73 : vector<2x128xi1>, vector<2x128xf32>
    %75 = arith.mulf %65, %74 : vector<2x128xf32>
    %76 = arith.addf %75, %57 : vector<2x128xf32>
    %c4 = arith.constant 4 : index
    %c0_29 = arith.constant 0 : index
    %c0_30 = arith.constant 0 : index
    %77 = vector.load %arg3[%c4, %c0_29, %c0_30] : memref<5x3x128xf32, #tpu.memory_space<vmem>>, vector<1x3x128xf32>
    %78 = vector.shape_cast %77 : vector<1x3x128xf32> to vector<3x128xf32>
    %c4_31 = arith.constant 4 : index
    %c0_32 = arith.constant 0 : index
    %c0_33 = arith.constant 0 : index
    %79 = vector.load %arg2[%c4_31, %c0_32, %c0_33] : memref<5x128x128xf32, #tpu.memory_space<vmem>>, vector<1x128x128xf32>
    %80 = vector.shape_cast %79 : vector<1x128x128xf32> to vector<128x128xf32>
    %cst_34 = arith.constant dense<0.000000e+00> : vector<2x128xf32>
    %81 = tpu.matmul %76, %80, %cst_34 {dimension_numbers = #tpu.dot_dimension_numbers<[1], [0], [0], [1], [0, 0, 1, 1], [], []>} : vector<2x128xf32>, vector<128x128xf32>, vector<2x128xf32> -> vector<2x128xf32>
    %82 = vector.extract_strided_slice %78 {offsets = [0, 0], sizes = [1, 128], strides = [1, 1]} : vector<3x128xf32> to vector<1x128xf32>
    %83 = vector.broadcast %82 : vector<1x128xf32> to vector<2x128xf32>
    %84 = arith.addf %81, %83 : vector<2x128xf32>
    %85 = arith.addf %84, %76 : vector<2x128xf32>
    %c0_35 = arith.constant 0 : index
    %c0_36 = arith.constant 0 : index
    %86 = vector.load %arg4[%c0_35, %c0_36] : memref<2x128xf32, #tpu.memory_space<vmem>>, vector<2x128xf32>
    tpu.vector_store %arg4[%c0_35, %c0_36], %85 {strides = array<i32>} : memref<2x128xf32, #tpu.memory_space<vmem>>, vector<2x128xf32>,
    return
  }
  func.func @transform_0(%arg0: i32) -> (i32, i32) {
    %c0_i32 = arith.constant 0 : i32
    %c0_i32_0 = arith.constant 0 : i32
    return %arg0, %c0_i32 : i32, i32
  }
  func.func @transform_1(%arg0: i32) -> (i32, i32, i32) {
    %c0_i32 = arith.constant 0 : i32
    %c0_i32_0 = arith.constant 0 : i32
    %c0_i32_1 = arith.constant 0 : i32
    %c0_i32_2 = arith.constant 0 : i32
    return %c0_i32, %c0_i32_0, %c0_i32_1 : i32, i32, i32
  }
  func.func @transform_2(%arg0: i32) -> (i32, i32, i32) {
    %c0_i32 = arith.constant 0 : i32
    %c0_i32_0 = arith.constant 0 : i32
    %c0_i32_1 = arith.constant 0 : i32
    %c0_i32_2 = arith.constant 0 : i32
    return %c0_i32, %c0_i32_0, %c0_i32_1 : i32, i32, i32
  }
  func.func @transform_3(%arg0: i32) -> (i32, i32) {
    %c0_i32 = arith.constant 0 : i32
    %c0_i32_0 = arith.constant 0 : i32
    return %arg0, %c0_i32 : i32, i32
  }
}

</mosaic_0001>

<llo_original>
// kernel: tpu_custom_call.1
$region0: #{tpu_custom_call.1}
  #allocation0 [shape = 'u32[]', space=smem, size = 0x4, offset = 0x4, fixed_abs, tag = 'smem constant byte address 0x4 - core index']
  #allocation1 [shape = 'u32[144,128]{1,0:T(1,128)}', space=vmem, size = 0x12000, scoped, tag = 'internal scratch']
  %s0 = inlined_call_operand.hbm [shape: f32[2,128], index: 0, kind: input, shape index: {}]
  %s1 = inlined_call_operand.hbm [shape: f32[5,128,128], index: 1, kind: input, shape index: {}]
  %s2 = inlined_call_operand.hbm [shape: f32[5,3,128], index: 2, kind: input, shape index: {}]
  %s3 = inlined_call_operand.hbm [shape: f32[2,128], index: 3, kind: output, shape index: {}]
  %s4 = sld [smem:[#allocation0]]
  $region34: #{tpu_custom_call.1} parent=0
    _
  %s6 = ssub.s32 1, %s4
  %s7 = scalar_select 0, %s6, %s4
  $region1: #{tpu_custom_call.1} parent=0
    #allocation2 [shape = 'u8[1024]{0}', space=vmem, size = 0x400, scoped, tag = 'input window, operand 0, single buffered']
    #allocation3 [shape = 's32[1]{0}', space=sflag, size = 0x4, scoped, tag = 'scoped memory for tpu_custom_call.1']
    #allocation4 [shape = 's32[1]{0}', space=sflag, size = 0x4, scoped, tag = 'scoped memory for tpu_custom_call.1']
    #allocation5 [shape = 'u8[327680]{0}', space=vmem, size = 0x50000, scoped, tag = 'input window, operand 1, single buffered']
    #allocation6 [shape = 's32[1]{0}', space=sflag, size = 0x4, scoped, tag = 'scoped memory for tpu_custom_call.1']
    #allocation7 [shape = 'u8[10240]{0}', space=vmem, size = 0x2800, scoped, tag = 'input window, operand 2, single buffered']
    #allocation8 [shape = 'u8[1024]{0}', space=vmem, size = 0x400, scoped, tag = 'output window, operand 0, single buffered']
    %8 = vsyncpa [#allocation3], 0
    %9 = vsyncpa [#allocation6], 0
    %10 = vsyncpa [#allocation4], 0
    // Predicated region
    $region2: #{tpu_custom_call.1} parent=1 // pred_check
      _
    $region3: #{tpu_custom_call.1} parent=1 // pred_check_branch
      %12 = sbr.rel (0) target = $region5
    $region4: #{tpu_custom_call.1} parent=1 // pred_region
      %s14 = ssub.s32 32, 32
      %15 = vsyncadd [#allocation3], %s14
      %s17 = sshll.u32 [#allocation2], 4
      %s18 = int_to_ptr.vmem [resolvable:$true] %s17
      %20 = dma.hbm_to_vmem [thread:$0]  %s0, 32, %s18, [#allocation3]
    $region5: #{tpu_custom_call.1} parent=1 // pred_fallthru
      _
    // Predicated region
    $region6: #{tpu_custom_call.1} parent=1 // pred_check
      _
    $region7: #{tpu_custom_call.1} parent=1 // pred_check_branch
      %22 = sbr.rel (0) target = $region9
    $region8: #{tpu_custom_call.1} parent=1 // pred_region
      %s24 = ssub.s32 10240, 10240
      %25 = vsyncadd [#allocation6], %s24
      %s26 = sshll.u32 [#allocation5], 4
      %s27 = int_to_ptr.vmem [resolvable:$true] %s26
      %32 = dma.hbm_to_vmem [thread:$0]  %s1, 10240, %s27, [#allocation6], 128, 128, 8
    $region9: #{tpu_custom_call.1} parent=1 // pred_fallthru
      _
    // Predicated region
    $region10: #{tpu_custom_call.1} parent=1 // pred_check
      _
    $region11: #{tpu_custom_call.1} parent=1 // pred_check_branch
      %34 = sbr.rel (0) target = $region13
    $region12: #{tpu_custom_call.1} parent=1 // pred_region
      %s36 = ssub.s32 320, 320
      %37 = vsyncadd [#allocation6], %s36
      %s38 = sshll.u32 [#allocation7], 4
      %s39 = int_to_ptr.vmem [resolvable:$true] %s38
      %44 = dma.hbm_to_vmem [thread:$0]  %s2, 320, %s39, [#allocation6], 64, 64, 4
    $region13: #{tpu_custom_call.1} parent=1 // pred_fallthru
      _
    // Predicated region
    $region14: #{tpu_custom_call.1} parent=1 // pred_check
      _
    $region15: #{tpu_custom_call.1} parent=1 // pred_check_branch
      %46 = sbr.rel (0) target = $region17
    $region16: #{tpu_custom_call.1} parent=1 // pred_region
      %47 = dma.done [#allocation3], 32
    $region17: #{tpu_custom_call.1} parent=1 // pred_fallthru
      _
    // Predicated region
    $region18: #{tpu_custom_call.1} parent=1 // pred_check
      _
    $region19: #{tpu_custom_call.1} parent=1 // pred_check_branch
      %49 = sbr.rel (0) target = $region21
    $region20: #{tpu_custom_call.1} parent=1 // pred_region
      %50 = dma.done [#allocation6], 10240
    $region21: #{tpu_custom_call.1} parent=1 // pred_fallthru
      _
    // Predicated region
    $region22: #{tpu_custom_call.1} parent=1 // pred_check
      _
    $region23: #{tpu_custom_call.1} parent=1 // pred_check_branch
      %52 = sbr.rel (0) target = $region25
    $region24: #{tpu_custom_call.1} parent=1 // pred_region
      %53 = dma.done [#allocation6], 320
    $region25: #{tpu_custom_call.1} parent=1 // pred_fallthru
      _
    %v54 = vld [vmem:[#allocation2] sm:$0x3]
    %v55 = vld [vmem:[#allocation7] sm:$0x7]
    %v56 = vld [vmem:[#allocation5] sm:$0xff]
    %v57 = vld [vmem:[#allocation5 + $0x8] sm:$0xff]
    %v58 = vld [vmem:[#allocation5 + $0x10] sm:$0xff]
    %v59 = vld [vmem:[#allocation5 + $0x18] sm:$0xff]
    %v60 = vld [vmem:[#allocation5 + $0x20] sm:$0xff]
    %v61 = vld [vmem:[#allocation5 + $0x28] sm:$0xff]
    %v62 = vld [vmem:[#allocation5 + $0x30] sm:$0xff]
    %v63 = vld [vmem:[#allocation5 + $0x38] sm:$0xff]
    %v64 = vld [vmem:[#allocation5 + $0x40] sm:$0xff]
    %v65 = vld [vmem:[#allocation5 + $0x48] sm:$0xff]
    %v66 = vld [vmem:[#allocation5 + $0x50] sm:$0xff]
    %v67 = vld [vmem:[#allocation5 + $0x58] sm:$0xff]
    %v68 = vld [vmem:[#allocation5 + $0x60] sm:$0xff]
    %v69 = vld [vmem:[#allocation5 + $0x68] sm:$0xff]
    %v70 = vld [vmem:[#allocation5 + $0x70] sm:$0xff]
    %v71 = vld [vmem:[#allocation5 + $0x78] sm:$0xff]
    %v72 = vlaneseq
    %v73 = vshrl.u32 %v72, 7
    %v74 = vsub.s32 0, %v73
    %v75 = vrot.slane %v55, %v74
    %76 = vmatprep.subr.mxu0 0.0
    %77 = vmatpush1.msra.mxu0 %v56
    %78 = vmatprep.subr.mxu0 0.0
    %79 = vmatpush1.msra.mxu0 %v57
    %80 = vmatprep.subr.mxu0 0.0
    %81 = vmatpush1.msra.mxu0 %v58
    %82 = vmatprep.subr.mxu0 0.0
    %83 = vmatpush1.msra.mxu0 %v59
    %84 = vmatprep.subr.mxu0 0.0
    %85 = vmatpush1.msra.mxu0 %v60
    %86 = vmatprep.subr.mxu0 0.0
    %87 = vmatpush1.msra.mxu0 %v61
    %88 = vmatprep.subr.mxu0 0.0
    %89 = vmatpush1.msra.mxu0 %v62
    %90 = vmatprep.subr.mxu0 0.0
    %91 = vmatpush1.msra.mxu0 %v63
    %92 = vmatprep.subr.mxu0 0.0
    %93 = vmatpush1.msra.mxu0 %v64
    %94 = vmatprep.subr.mxu0 0.0
    %95 = vmatpush1.msra.mxu0 %v65
    %96 = vmatprep.subr.mxu0 0.0
    %97 = vmatpush1.msra.mxu0 %v66
    %98 = vmatprep.subr.mxu0 0.0
    %99 = vmatpush1.msra.mxu0 %v67
    %100 = vmatprep.subr.mxu0 0.0
    %101 = vmatpush1.msra.mxu0 %v68
    %102 = vmatprep.subr.mxu0 0.0
    %103 = vmatpush1.msra.mxu0 %v69
    %104 = vmatprep.subr.mxu0 0.0
    %105 = vmatpush1.msra.mxu0 %v70
    %106 = vmatprep.subr.mxu0 0.0
    %107 = vmatpush1.msra.mxu0 %v71
    %108 = vmatprep.subr.mxu0 0.0
    %109 = vmatpush1.msra.mxu0 0.0
    %110 = vmatprep.subr.mxu0 0.0
    %111 = vmatpush1.msra.mxu0 0.0
    %112 = vmatprep.subr.mxu0 0.0
    %113 = vmatpush1.msra.mxu0 0.0
    %114 = vmatprep.subr.mxu0 0.0
    %115 = vmatpush1.msra.mxu0 0.0
    %116 = vmatprep.subr.mxu0 0.0
    %117 = vmatpush1.msra.mxu0 0.0
    %118 = vmatprep.subr.mxu0 0.0
    %119 = vmatpush1.msra.mxu0 0.0
    %120 = vmatprep.subr.mxu0 0.0
    %121 = vmatpush1.msra.mxu0 0.0
    %122 = vmatprep.subr.mxu0 0.0
    %123 = vmatpush1.msra.mxu0 0.0
    %124 = vmatprep.subr.mxu0 0.0
    %125 = vmatpush1.msra.mxu0 0.0
    %126 = vmatprep.subr.mxu0 0.0
    %127 = vmatpush1.msra.mxu0 0.0
    %128 = vmatprep.subr.mxu0 0.0
    %129 = vmatpush1.msra.mxu0 0.0
    %130 = vmatprep.subr.mxu0 0.0
    %131 = vmatpush1.msra.mxu0 0.0
    %132 = vmatprep.subr.mxu0 0.0
    %133 = vmatpush1.msra.mxu0 0.0
    %134 = vmatprep.subr.mxu0 0.0
    %135 = vmatpush1.msra.mxu0 0.0
    %136 = vmatprep.subr.mxu0 0.0
    %137 = vmatpush1.msra.mxu0 0.0
    %138 = vmatprep.subr.mxu0 0.0
    %139 = vmatpush1.msra.mxu0 0.0
    %140 = vmatprep.mubr.f32.mxu0 0.0
    %141 = vmatmul.mubr.f32.gmra.mrb[0].mxu0 %v54
    %v142 = vpop.f32.mrb[0].mxu0
    %v143 = vadd.f32 %v75, %v142
    %v144 = vpop.f32.mrb[0].mxu0
    %145 = vdwg.mxu0
    %vm146 = vcmp.gt.f32.partialorder %v143, 0.0
    %v147 = vlaneseq
    %v148 = vshrl.u32 %v147, 7
    %v149 = vsub.s32 1, %v148
    %v150 = vrot.slane %v55, %v149
    %v151 = vlaneseq
    %v152 = vshrl.u32 %v151, 7
    %v153 = vsub.s32 2, %v152
    %v154 = vrot.slane %v55, %v153
    %v155 = vsel %vm146, %v150, %v154
    %v156 = vmul.f32 %v143, %v155
    %v157 = vadd.f32 %v156, %v54
    %s158 = scalar_lea.vmem [#allocation7], 4
    %v159 = vld [vmem:[%s158] sm:$0x7]
    %s160 = scalar_lea.vmem [#allocation5], 128
    %v161 = vld [vmem:[%s160] sm:$0xff]
    %v162 = vld [vmem:[%s160 + $0x8] sm:$0xff]
    %v163 = vld [vmem:[%s160 + $0x10] sm:$0xff]
    %v164 = vld [vmem:[%s160 + $0x18] sm:$0xff]
    %v165 = vld [vmem:[%s160 + $0x20] sm:$0xff]
    %v166 = vld [vmem:[%s160 + $0x28] sm:$0xff]
    %v167 = vld [vmem:[%s160 + $0x30] sm:$0xff]
    %v168 = vld [vmem:[%s160 + $0x38] sm:$0xff]
    %v169 = vld [vmem:[%s160 + $0x40] sm:$0xff]
    %v170 = vld [vmem:[%s160 + $0x48] sm:$0xff]
    %v171 = vld [vmem:[%s160 + $0x50] sm:$0xff]
    %v172 = vld [vmem:[%s160 + $0x58] sm:$0xff]
    %v173 = vld [vmem:[%s160 + $0x60] sm:$0xff]
    %v174 = vld [vmem:[%s160 + $0x68] sm:$0xff]
    %v175 = vld [vmem:[%s160 + $0x70] sm:$0xff]
    %v176 = vld [vmem:[%s160 + $0x78] sm:$0xff]
    %v177 = vlaneseq
    %v178 = vshrl.u32 %v177, 7
    %v179 = vsub.s32 0, %v178
    %v180 = vrot.slane %v159, %v179
    %181 = vmatprep.subr.mxu0 0.0
    %182 = vmatpush1.msra.mxu0 %v161
    %183 = vmatprep.subr.mxu0 0.0
    %184 = vmatpush1.msra.mxu0 %v162
    %185 = vmatprep.subr.mxu0 0.0
    %186 = vmatpush1.msra.mxu0 %v163
    %187 = vmatprep.subr.mxu0 0.0
    %188 = vmatpush1.msra.mxu0 %v164
    %189 = vmatprep.subr.mxu0 0.0
    %190 = vmatpush1.msra.mxu0 %v165
    %191 = vmatprep.subr.mxu0 0.0
    %192 = vmatpush1.msra.mxu0 %v166
    %193 = vmatprep.subr.mxu0 0.0
    %194 = vmatpush1.msra.mxu0 %v167
    %195 = vmatprep.subr.mxu0 0.0
    %196 = vmatpush1.msra.mxu0 %v168
    %197 = vmatprep.subr.mxu0 0.0
    %198 = vmatpush1.msra.mxu0 %v169
    %199 = vmatprep.subr.mxu0 0.0
    %200 = vmatpush1.msra.mxu0 %v170
    %201 = vmatprep.subr.mxu0 0.0
    %202 = vmatpush1.msra.mxu0 %v171
    %203 = vmatprep.subr.mxu0 0.0
    %204 = vmatpush1.msra.mxu0 %v172
    %205 = vmatprep.subr.mxu0 0.0
    %206 = vmatpush1.msra.mxu0 %v173
    %207 = vmatprep.subr.mxu0 0.0
    %208 = vmatpush1.msra.mxu0 %v174
    %209 = vmatprep.subr.mxu0 0.0
    %210 = vmatpush1.msra.mxu0 %v175
    %211 = vmatprep.subr.mxu0 0.0
    %212 = vmatpush1.msra.mxu0 %v176
    %213 = vmatprep.subr.mxu0 0.0
    %214 = vmatpush1.msra.mxu0 0.0
    %215 = vmatprep.subr.mxu0 0.0
    %216 = vmatpush1.msra.mxu0 0.0
    %217 = vmatprep.subr.mxu0 0.0
    %218 = vmatpush1.msra.mxu0 0.0
    %219 = vmatprep.subr.mxu0 0.0
    %220 = vmatpush1.msra.mxu0 0.0
    %221 = vmatprep.subr.mxu0 0.0
    %222 = vmatpush1.msra.mxu0 0.0
    %223 = vmatprep.subr.mxu0 0.0
    %224 = vmatpush1.msra.mxu0 0.0
    %225 = vmatprep.subr.mxu0 0.0
    %226 = vmatpush1.msra.mxu0 0.0
    %227 = vmatprep.subr.mxu0 0.0
    %228 = vmatpush1.msra.mxu0 0.0
    %229 = vmatprep.subr.mxu0 0.0
    %230 = vmatpush1.msra.mxu0 0.0
    %231 = vmatprep.subr.mxu0 0.0
    %232 = vmatpush1.msra.mxu0 0.0
    %233 = vmatprep.subr.mxu0 0.0
    %234 = vmatpush1.msra.mxu0 0.0
    %235 = vmatprep.subr.mxu0 0.0
    %236 = vmatpush1.msra.mxu0 0.0
    %237 = vmatprep.subr.mxu0 0.0
    %238 = vmatpush1.msra.mxu0 0.0
    %239 = vmatprep.subr.mxu0 0.0
    %240 = vmatpush1.msra.mxu0 0.0
    %241 = vmatprep.subr.mxu0 0.0
    %242 = vmatpush1.msra.mxu0 0.0
    %243 = vmatprep.subr.mxu0 0.0
    %244 = vmatpush1.msra.mxu0 0.0
    %245 = vmatprep.mubr.f32.mxu0 0.0
    %246 = vmatmul.mubr.f32.gmra.mrb[0].mxu0 %v157
    %v247 = vpop.f32.mrb[0].mxu0
    %v248 = vadd.f32 %v180, %v247
    %v249 = vpop.f32.mrb[0].mxu0
    %250 = vdwg.mxu0
    %vm251 = vcmp.gt.f32.partialorder %v248, 0.0
    %v252 = vlaneseq
    %v253 = vshrl.u32 %v252, 7
    %v254 = vsub.s32 1, %v253
    %v255 = vrot.slane %v159, %v254
    %v256 = vlaneseq
    %v257 = vshrl.u32 %v256, 7
    %v258 = vsub.s32 2, %v257
    %v259 = vrot.slane %v159, %v258
    %v260 = vsel %vm251, %v255, %v259
    %v261 = vmul.f32 %v248, %v260
    %v262 = vadd.f32 %v261, %v157
    %s263 = scalar_lea.vmem [#allocation7], 8
    %v264 = vld [vmem:[%s263] sm:$0x7]
    %s265 = scalar_lea.vmem [#allocation5], 256
    %v266 = vld [vmem:[%s265] sm:$0xff]
    %v267 = vld [vmem:[%s265 + $0x8] sm:$0xff]
    %v268 = vld [vmem:[%s265 + $0x10] sm:$0xff]
    %v269 = vld [vmem:[%s265 + $0x18] sm:$0xff]
    %v270 = vld [vmem:[%s265 + $0x20] sm:$0xff]
    %v271 = vld [vmem:[%s265 + $0x28] sm:$0xff]
    %v272 = vld [vmem:[%s265 + $0x30] sm:$0xff]
    %v273 = vld [vmem:[%s265 + $0x38] sm:$0xff]
    %v274 = vld [vmem:[%s265 + $0x40] sm:$0xff]
    %v275 = vld [vmem:[%s265 + $0x48] sm:$0xff]
    %v276 = vld [vmem:[%s265 + $0x50] sm:$0xff]
    %v277 = vld [vmem:[%s265 + $0x58] sm:$0xff]
    %v278 = vld [vmem:[%s265 + $0x60] sm:$0xff]
    %v279 = vld [vmem:[%s265 + $0x68] sm:$0xff]
    %v280 = vld [vmem:[%s265 + $0x70] sm:$0xff]
    %v281 = vld [vmem:[%s265 + $0x78] sm:$0xff]
    %v282 = vlaneseq
    %v283 = vshrl.u32 %v282, 7
    %v284 = vsub.s32 0, %v283
    %v285 = vrot.slane %v264, %v284
    %286 = vmatprep.subr.mxu0 0.0
    %287 = vmatpush1.msra.mxu0 %v266
    %288 = vmatprep.subr.mxu0 0.0
    %289 = vmatpush1.msra.mxu0 %v267
    %290 = vmatprep.subr.mxu0 0.0
    %291 = vmatpush1.msra.mxu0 %v268
    %292 = vmatprep.subr.mxu0 0.0
    %293 = vmatpush1.msra.mxu0 %v269
    %294 = vmatprep.subr.mxu0 0.0
    %295 = vmatpush1.msra.mxu0 %v270
    %296 = vmatprep.subr.mxu0 0.0
    %297 = vmatpush1.msra.mxu0 %v271
    %298 = vmatprep.subr.mxu0 0.0
    %299 = vmatpush1.msra.mxu0 %v272
    %300 = vmatprep.subr.mxu0 0.0
    %301 = vmatpush1.msra.mxu0 %v273
    %302 = vmatprep.subr.mxu0 0.0
    %303 = vmatpush1.msra.mxu0 %v274
    %304 = vmatprep.subr.mxu0 0.0
    %305 = vmatpush1.msra.mxu0 %v275
    %306 = vmatprep.subr.mxu0 0.0
    %307 = vmatpush1.msra.mxu0 %v276
    %308 = vmatprep.subr.mxu0 0.0
    %309 = vmatpush1.msra.mxu0 %v277
    %310 = vmatprep.subr.mxu0 0.0
    %311 = vmatpush1.msra.mxu0 %v278
    %312 = vmatprep.subr.mxu0 0.0
    %313 = vmatpush1.msra.mxu0 %v279
    %314 = vmatprep.subr.mxu0 0.0
    %315 = vmatpush1.msra.mxu0 %v280
    %316 = vmatprep.subr.mxu0 0.0
    %317 = vmatpush1.msra.mxu0 %v281
    %318 = vmatprep.subr.mxu0 0.0
    %319 = vmatpush1.msra.mxu0 0.0
    %320 = vmatprep.subr.mxu0 0.0
    %321 = vmatpush1.msra.mxu0 0.0
    %322 = vmatprep.subr.mxu0 0.0
    %323 = vmatpush1.msra.mxu0 0.0
    %324 = vmatprep.subr.mxu0 0.0
    %325 = vmatpush1.msra.mxu0 0.0
    %326 = vmatprep.subr.mxu0 0.0
    %327 = vmatpush1.msra.mxu0 0.0
    %328 = vmatprep.subr.mxu0 0.0
    %329 = vmatpush1.msra.mxu0 0.0
    %330 = vmatprep.subr.mxu0 0.0
    %331 = vmatpush1.msra.mxu0 0.0
    %332 = vmatprep.subr.mxu0 0.0
    %333 = vmatpush1.msra.mxu0 0.0
    %334 = vmatprep.subr.mxu0 0.0
    %335 = vmatpush1.msra.mxu0 0.0
    %336 = vmatprep.subr.mxu0 0.0
    %337 = vmatpush1.msra.mxu0 0.0
    %338 = vmatprep.subr.mxu0 0.0
    %339 = vmatpush1.msra.mxu0 0.0
    %340 = vmatprep.subr.mxu0 0.0
    %341 = vmatpush1.msra.mxu0 0.0
    %342 = vmatprep.subr.mxu0 0.0
    %343 = vmatpush1.msra.mxu0 0.0
    %344 = vmatprep.subr.mxu0 0.0
    %345 = vmatpush1.msra.mxu0 0.0
    %346 = vmatprep.subr.mxu0 0.0
    %347 = vmatpush1.msra.mxu0 0.0
    %348 = vmatprep.subr.mxu0 0.0
    %349 = vmatpush1.msra.mxu0 0.0
    %350 = vmatprep.mubr.f32.mxu0 0.0
    %351 = vmatmul.mubr.f32.gmra.mrb[0].mxu0 %v262
    %v352 = vpop.f32.mrb[0].mxu0
    %v353 = vadd.f32 %v285, %v352
    %v354 = vpop.f32.mrb[0].mxu0
    %355 = vdwg.mxu0
    %vm356 = vcmp.gt.f32.partialorder %v353, 0.0
    %v357 = vlaneseq
    %v358 = vshrl.u32 %v357, 7
    %v359 = vsub.s32 1, %v358
    %v360 = vrot.slane %v264, %v359
    %v361 = vlaneseq
    %v362 = vshrl.u32 %v361, 7
    %v363 = vsub.s32 2, %v362
    %v364 = vrot.slane %v264, %v363
    %v365 = vsel %vm356, %v360, %v364
    %v366 = vmul.f32 %v353, %v365
    %v367 = vadd.f32 %v366, %v262
    %s368 = scalar_lea.vmem [#allocation7], 12
    %v369 = vld [vmem:[%s368] sm:$0x7]
    %s370 = scalar_lea.vmem [#allocation5], 384
    %v371 = vld [vmem:[%s370] sm:$0xff]
    %v372 = vld [vmem:[%s370 + $0x8] sm:$0xff]
    %v373 = vld [vmem:[%s370 + $0x10] sm:$0xff]
    %v374 = vld [vmem:[%s370 + $0x18] sm:$0xff]
    %v375 = vld [vmem:[%s370 + $0x20] sm:$0xff]
    %v376 = vld [vmem:[%s370 + $0x28] sm:$0xff]
    %v377 = vld [vmem:[%s370 + $0x30] sm:$0xff]
    %v378 = vld [vmem:[%s370 + $0x38] sm:$0xff]
    %v379 = vld [vmem:[%s370 + $0x40] sm:$0xff]
    %v380 = vld [vmem:[%s370 + $0x48] sm:$0xff]
    %v381 = vld [vmem:[%s370 + $0x50] sm:$0xff]
    %v382 = vld [vmem:[%s370 + $0x58] sm:$0xff]
    %v383 = vld [vmem:[%s370 + $0x60] sm:$0xff]
    %v384 = vld [vmem:[%s370 + $0x68] sm:$0xff]
    %v385 = vld [vmem:[%s370 + $0x70] sm:$0xff]
    %v386 = vld [vmem:[%s370 + $0x78] sm:$0xff]
    %v387 = vlaneseq
    %v388 = vshrl.u32 %v387, 7
    %v389 = vsub.s32 0, %v388
    %v390 = vrot.slane %v369, %v389
    %391 = vmatprep.subr.mxu0 0.0
    %392 = vmatpush1.msra.mxu0 %v371
    %393 = vmatprep.subr.mxu0 0.0
    %394 = vmatpush1.msra.mxu0 %v372
    %395 = vmatprep.subr.mxu0 0.0
    %396 = vmatpush1.msra.mxu0 %v373
    %397 = vmatprep.subr.mxu0 0.0
    %398 = vmatpush1.msra.mxu0 %v374
    %399 = vmatprep.subr.mxu0 0.0
    %400 = vmatpush1.msra.mxu0 %v375
    %401 = vmatprep.subr.mxu0 0.0
    %402 = vmatpush1.msra.mxu0 %v376
    %403 = vmatprep.subr.mxu0 0.0
    %404 = vmatpush1.msra.mxu0 %v377
    %405 = vmatprep.subr.mxu0 0.0
    %406 = vmatpush1.msra.mxu0 %v378
    %407 = vmatprep.subr.mxu0 0.0
    %408 = vmatpush1.msra.mxu0 %v379
    %409 = vmatprep.subr.mxu0 0.0
    %410 = vmatpush1.msra.mxu0 %v380
    %411 = vmatprep.subr.mxu0 0.0
    %412 = vmatpush1.msra.mxu0 %v381
    %413 = vmatprep.subr.mxu0 0.0
    %414 = vmatpush1.msra.mxu0 %v382
    %415 = vmatprep.subr.mxu0 0.0
    %416 = vmatpush1.msra.mxu0 %v383
    %417 = vmatprep.subr.mxu0 0.0
    %418 = vmatpush1.msra.mxu0 %v384
    %419 = vmatprep.subr.mxu0 0.0
    %420 = vmatpush1.msra.mxu0 %v385
    %421 = vmatprep.subr.mxu0 0.0
    %422 = vmatpush1.msra.mxu0 %v386
    %423 = vmatprep.subr.mxu0 0.0
    %424 = vmatpush1.msra.mxu0 0.0
    %425 = vmatprep.subr.mxu0 0.0
    %426 = vmatpush1.msra.mxu0 0.0
    %427 = vmatprep.subr.mxu0 0.0
    %428 = vmatpush1.msra.mxu0 0.0
    %429 = vmatprep.subr.mxu0 0.0
    %430 = vmatpush1.msra.mxu0 0.0
    %431 = vmatprep.subr.mxu0 0.0
    %432 = vmatpush1.msra.mxu0 0.0
    %433 = vmatprep.subr.mxu0 0.0
    %434 = vmatpush1.msra.mxu0 0.0
    %435 = vmatprep.subr.mxu0 0.0
    %436 = vmatpush1.msra.mxu0 0.0
    %437 = vmatprep.subr.mxu0 0.0
    %438 = vmatpush1.msra.mxu0 0.0
    %439 = vmatprep.subr.mxu0 0.0
    %440 = vmatpush1.msra.mxu0 0.0
    %441 = vmatprep.subr.mxu0 0.0
    %442 = vmatpush1.msra.mxu0 0.0
    %443 = vmatprep.subr.mxu0 0.0
    %444 = vmatpush1.msra.mxu0 0.0
    %445 = vmatprep.subr.mxu0 0.0
    %446 = vmatpush1.msra.mxu0 0.0
    %447 = vmatprep.subr.mxu0 0.0
    %448 = vmatpush1.msra.mxu0 0.0
    %449 = vmatprep.subr.mxu0 0.0
    %450 = vmatpush1.msra.mxu0 0.0
    %451 = vmatprep.subr.mxu0 0.0
    %452 = vmatpush1.msra.mxu0 0.0
    %453 = vmatprep.subr.mxu0 0.0
    %454 = vmatpush1.msra.mxu0 0.0
    %455 = vmatprep.mubr.f32.mxu0 0.0
    %456 = vmatmul.mubr.f32.gmra.mrb[0].mxu0 %v367
    %v457 = vpop.f32.mrb[0].mxu0
    %v458 = vadd.f32 %v390, %v457
    %v459 = vpop.f32.mrb[0].mxu0
    %460 = vdwg.mxu0
    %vm461 = vcmp.gt.f32.partialorder %v458, 0.0
    %v462 = vlaneseq
    %v463 = vshrl.u32 %v462, 7
    %v464 = vsub.s32 1, %v463
    %v465 = vrot.slane %v369, %v464
    %v466 = vlaneseq
    %v467 = vshrl.u32 %v466, 7
    %v468 = vsub.s32 2, %v467
    %v469 = vrot.slane %v369, %v468
    %v470 = vsel %vm461, %v465, %v469
    %v471 = vmul.f32 %v458, %v470
    %v472 = vadd.f32 %v471, %v367
    %s473 = scalar_lea.vmem [#allocation7], 16
    %v474 = vld [vmem:[%s473] sm:$0x7]
    %s475 = scalar_lea.vmem [#allocation5], 512
    %v476 = vld [vmem:[%s475] sm:$0xff]
    %v477 = vld [vmem:[%s475 + $0x8] sm:$0xff]
    %v478 = vld [vmem:[%s475 + $0x10] sm:$0xff]
    %v479 = vld [vmem:[%s475 + $0x18] sm:$0xff]
    %v480 = vld [vmem:[%s475 + $0x20] sm:$0xff]
    %v481 = vld [vmem:[%s475 + $0x28] sm:$0xff]
    %v482 = vld [vmem:[%s475 + $0x30] sm:$0xff]
    %v483 = vld [vmem:[%s475 + $0x38] sm:$0xff]
    %v484 = vld [vmem:[%s475 + $0x40] sm:$0xff]
    %v485 = vld [vmem:[%s475 + $0x48] sm:$0xff]
    %v486 = vld [vmem:[%s475 + $0x50] sm:$0xff]
    %v487 = vld [vmem:[%s475 + $0x58] sm:$0xff]
    %v488 = vld [vmem:[%s475 + $0x60] sm:$0xff]
    %v489 = vld [vmem:[%s475 + $0x68] sm:$0xff]
    %v490 = vld [vmem:[%s475 + $0x70] sm:$0xff]
    %v491 = vld [vmem:[%s475 + $0x78] sm:$0xff]
    %v492 = vlaneseq
    %v493 = vshrl.u32 %v492, 7
    %v494 = vsub.s32 0, %v493
    %v495 = vrot.slane %v474, %v494
    %496 = vmatprep.subr.mxu0 0.0
    %497 = vmatpush1.msra.mxu0 %v476
    %498 = vmatprep.subr.mxu0 0.0
    %499 = vmatpush1.msra.mxu0 %v477
    %500 = vmatprep.subr.mxu0 0.0
    %501 = vmatpush1.msra.mxu0 %v478
    %502 = vmatprep.subr.mxu0 0.0
    %503 = vmatpush1.msra.mxu0 %v479
    %504 = vmatprep.subr.mxu0 0.0
    %505 = vmatpush1.msra.mxu0 %v480
    %506 = vmatprep.subr.mxu0 0.0
    %507 = vmatpush1.msra.mxu0 %v481
    %508 = vmatprep.subr.mxu0 0.0
    %509 = vmatpush1.msra.mxu0 %v482
    %510 = vmatprep.subr.mxu0 0.0
    %511 = vmatpush1.msra.mxu0 %v483
    %512 = vmatprep.subr.mxu0 0.0
    %513 = vmatpush1.msra.mxu0 %v484
    %514 = vmatprep.subr.mxu0 0.0
    %515 = vmatpush1.msra.mxu0 %v485
    %516 = vmatprep.subr.mxu0 0.0
    %517 = vmatpush1.msra.mxu0 %v486
    %518 = vmatprep.subr.mxu0 0.0
    %519 = vmatpush1.msra.mxu0 %v487
    %520 = vmatprep.subr.mxu0 0.0
    %521 = vmatpush1.msra.mxu0 %v488
    %522 = vmatprep.subr.mxu0 0.0
    %523 = vmatpush1.msra.mxu0 %v489
    %524 = vmatprep.subr.mxu0 0.0
    %525 = vmatpush1.msra.mxu0 %v490
    %526 = vmatprep.subr.mxu0 0.0
    %527 = vmatpush1.msra.mxu0 %v491
    %528 = vmatprep.subr.mxu0 0.0
    %529 = vmatpush1.msra.mxu0 0.0
    %530 = vmatprep.subr.mxu0 0.0
    %531 = vmatpush1.msra.mxu0 0.0
    %532 = vmatprep.subr.mxu0 0.0
    %533 = vmatpush1.msra.mxu0 0.0
    %534 = vmatprep.subr.mxu0 0.0
    %535 = vmatpush1.msra.mxu0 0.0
    %536 = vmatprep.subr.mxu0 0.0
    %537 = vmatpush1.msra.mxu0 0.0
    %538 = vmatprep.subr.mxu0 0.0
    %539 = vmatpush1.msra.mxu0 0.0
    %540 = vmatprep.subr.mxu0 0.0
    %541 = vmatpush1.msra.mxu0 0.0
    %542 = vmatprep.subr.mxu0 0.0
    %543 = vmatpush1.msra.mxu0 0.0
    %544 = vmatprep.subr.mxu0 0.0
    %545 = vmatpush1.msra.mxu0 0.0
    %546 = vmatprep.subr.mxu0 0.0
    %547 = vmatpush1.msra.mxu0 0.0
    %548 = vmatprep.subr.mxu0 0.0
    %549 = vmatpush1.msra.mxu0 0.0
    %550 = vmatprep.subr.mxu0 0.0
    %551 = vmatpush1.msra.mxu0 0.0
    %552 = vmatprep.subr.mxu0 0.0
    %553 = vmatpush1.msra.mxu0 0.0
    %554 = vmatprep.subr.mxu0 0.0
    %555 = vmatpush1.msra.mxu0 0.0
    %556 = vmatprep.subr.mxu0 0.0
    %557 = vmatpush1.msra.mxu0 0.0
    %558 = vmatprep.subr.mxu0 0.0
    %559 = vmatpush1.msra.mxu0 0.0
    %560 = vmatprep.mubr.f32.mxu0 0.0
    %561 = vmatmul.mubr.f32.gmra.mrb[0].mxu0 %v472
    %v562 = vpop.f32.mrb[0].mxu0
    %v563 = vadd.f32 %v495, %v562
    %v564 = vpop.f32.mrb[0].mxu0
    %565 = vdwg.mxu0
    %v566 = vadd.f32 %v563, %v472
    %567 = vst [vmem:[#allocation8] sm:$0x3] %v566
    // Predicated region
    $region26: #{tpu_custom_call.1} parent=1 // pred_check
      _
    $region27: #{tpu_custom_call.1} parent=1 // pred_check_branch
      %569 = sbr.rel (0) target = $region29
    $region28: #{tpu_custom_call.1} parent=1 // pred_region
      %s571 = ssub.s32 32, 32
      %572 = vsyncadd [#allocation4], %s571
      %s574 = sshll.u32 [#allocation8], 4
      %s575 = int_to_ptr.vmem [resolvable:$true] %s574
      %577 = dma.vmem_to_hbm [thread:$0]  %s575, 32, %s3, [#allocation4]
    $region29: #{tpu_custom_call.1} parent=1 // pred_fallthru
      _
    // Predicated region
    $region30: #{tpu_custom_call.1} parent=1 // pred_check
      _
    $region31: #{tpu_custom_call.1} parent=1 // pred_check_branch
      %579 = sbr.rel (0) target = $region33
    $region32: #{tpu_custom_call.1} parent=1 // pred_region
      %580 = dma.done [#allocation4], 32
    $region33: #{tpu_custom_call.1} parent=1 // pred_fallthru
      _
    %581 = vsyncpa [#allocation3], 1
    %582 = vsyncpa [#allocation6], 1
    %583 = vsyncpa [#allocation4], 1

</llo_original>
